<compile_context>
chip_gen: v7x
topology: tpu7x:2x2x1
jax: 0.10.0
libtpu: 0.0.40
codegen_flags: <defaults>
</compile_context>

<pallas_src>
import functools

import jax
import jax.numpy as jnp
import numpy as np
from jax.experimental import pallas as pl
from jax.experimental.pallas import tpu as pltpu


def _rope_kernel(cos_ref, sin_ref, x_ref, o_ref):
    """out = x * cos_rep + swap_adjacent_lane_pairs(x) * sin_signed.

    cos_ref / sin_ref: (1, 1, BL) f32 ; x_ref: (1, H, BL) any float ; o_ref: (1, H, BL) f32.
    """
    x = x_ref[...].astype(jnp.float32)          # in-kernel upcast (no HBM f32 copy)
    bl = x.shape[-1]
    # sw[2i] = x[2i+1], sw[2i+1] = x[2i].  roll(x, s)[k] = x[(k - s) % bl], so
    # shift = bl-1 yields x[k+1] and shift = 1 yields x[k-1]; the wrapped lanes
    # are discarded by the parity select (bl is even, pairs never straddle a block).
    nxt = pltpu.roll(x, shift=bl - 1, axis=2)   # x[k+1 mod bl]
    prv = pltpu.roll(x, shift=1, axis=2)        # x[k-1 mod bl]
    lane = jax.lax.broadcasted_iota(jnp.int32, x.shape, dimension=2)
    sw = jnp.where((lane & 1) == 0, nxt, prv)
    o_ref[...] = (x * cos_ref[...] + sw * sin_ref[...]).astype(o_ref.dtype)


def _compute_phase(position_ids, dims_per_axis, c=10000.0):
    """phase[b, n, :] = concat_axis( pos[b, n, axis] * omega_axis )  -> (B, N, D//2)."""
    num_axes = position_ids.shape[-1]
    assert num_axes == len(dims_per_axis)
    phases = []
    for axis in range(num_axes):
        d = dims_per_axis[axis]
        assert d % 2 == 0
        # omega in float64 (like torch), rounded to f32 for the device-side product.
        scale = np.arange(0, d, 2, dtype=np.float64) / d
        omega = jnp.asarray((1.0 / (c ** scale)).astype(np.float32))       # (d/2,)
        pos = position_ids[..., axis].astype(jnp.float32)                  # (B, N)
        phases.append(pos[..., None] * omega[None, None, :])               # (B, N, d/2)
    return jnp.concatenate(phases, axis=-1)                                # (B, N, D/2)


def _pick_lane_block(L, H, x_itemsize, vmem_budget=8 * 1024 * 1024, max_lanes=4096):
    """Largest multiple-of-128 divisor of L, capped by a per-step VMEM budget."""
    if L % 128 != 0:
        return L  # fall back to full extent (only tiny/odd shapes)
    per_lane = 2 * (H * (x_itemsize + 4) + 2 * 4)   # x + out + cos + sin, double-buffered
    cap = max(128, min(max_lanes, (vmem_budget // per_lane) // 128 * 128, L))
    bl = 128
    for m in range(128, cap + 1, 128):
        if L % m == 0:
            bl = m
    return bl


@functools.partial(jax.jit, static_argnames=("dims_per_axis",))
def rope_nd_forward(x, position_ids, dims_per_axis):
    B, H, N, D = x.shape
    assert D == sum(dims_per_axis) and D % 2 == 0
    D2 = D // 2
    L = N * D

    # ---- precompute rotary tables, independent of H (tiny, computed once) ----
    phase = _compute_phase(position_ids, dims_per_axis)                    # (B, N, D2) f32
    cosv = jnp.cos(phase)
    sinv = jnp.sin(phase)
    cos_rep = jnp.repeat(cosv, 2, axis=-1)                                 # [c0,c0,c1,c1,...]
    sin_sgn = jnp.stack([-sinv, sinv], axis=-1).reshape(B, N, D)           # [-s0,s0,-s1,s1,...]
    cos_flat = cos_rep.reshape(B, 1, L)
    sin_flat = sin_sgn.reshape(B, 1, L)

    # ---- lane-dense flatten of x (contiguous reshape: free) ----
    x_flat = x.reshape(B, H, L)

    x_itemsize = jnp.dtype(x.dtype).itemsize
    BL = _pick_lane_block(L, H, x_itemsize)
    num_l = L // BL

    block_bytes = H * BL * (x_itemsize + 4) + 2 * BL * 4                   # one step's buffers
    vmem_limit = int(min(48 * 1024 * 1024, max(16 * 1024 * 1024, 4 * block_bytes)))

    out = pl.pallas_call(
        _rope_kernel,
        out_shape=jax.ShapeDtypeStruct((B, H, L), jnp.float32),
        grid=(B, num_l),
        in_specs=[
            pl.BlockSpec((1, 1, BL), lambda b, l: (b, 0, l)),   # cos_rep
            pl.BlockSpec((1, 1, BL), lambda b, l: (b, 0, l)),   # sin_signed
            pl.BlockSpec((1, H, BL), lambda b, l: (b, 0, l)),   # x
        ],
        out_specs=pl.BlockSpec((1, H, BL), lambda b, l: (b, 0, l)),
        compiler_params=pltpu.CompilerParams(
            dimension_semantics=("parallel", "parallel"),
            vmem_limit_bytes=vmem_limit,
        ),
    )(cos_flat, sin_flat, x_flat)

    # API-boundary view only (contiguous -> bitcast); matches torch output exactly.
    return out.reshape(B, H, N, D2, 1, 2)


def _reference(x, position_ids, dims_per_axis):
    """Pure-JAX reference mirroring the torch forward, for validation."""
    B, H, N, D = x.shape
    D2 = D // 2
    phase = _compute_phase(position_ids, dims_per_axis)                    # (B, N, D2)
    cos = jnp.cos(phase)[:, None]                                          # (B, 1, N, D2)
    sin = jnp.sin(phase)[:, None]
    xf = x.astype(jnp.float32).reshape(B, H, N, D2, 2)
    xe, xo = xf[..., 0], xf[..., 1]
    out0 = cos * xe - sin * xo
    out1 = sin * xe + cos * xo
    return jnp.stack([out0, out1], axis=-1).reshape(B, H, N, D2, 1, 2)


if __name__ == "__main__":
    key = jax.random.PRNGKey(0)
    k1, _ = jax.random.split(key)

    B, H = 2, 4
    dims_per_axis = (16, 16)          # 2-D rotary; total head dim D = 32
    D = sum(dims_per_axis)
    grid_h = grid_w = 4
    N = grid_h * grid_w               # 16 tokens on a 4x4 spatial grid

    x = jax.random.normal(k1, (B, H, N, D), dtype=jnp.float32)

    ii, jj = jnp.meshgrid(jnp.arange(grid_h), jnp.arange(grid_w), indexing="ij")
    pos = jnp.stack([ii.reshape(-1), jj.reshape(-1)], axis=-1).astype(jnp.float32)  # (N, 2)
    position_ids = jnp.broadcast_to(pos[None], (B, N, 2))

    # float32 input path
    out = jax.block_until_ready(rope_nd_forward(x, position_ids, dims_per_axis=dims_per_axis))
    ref = _reference(x, position_ids, dims_per_axis)
    assert out.shape == (B, H, N, D // 2, 1, 2)
    assert out.dtype == jnp.float32
    np.testing.assert_allclose(np.asarray(out), np.asarray(ref), rtol=1e-5, atol=1e-5)

    # bfloat16 input path: no wrapper-side cast, in-kernel upcast; output stays f32.
    x_bf16 = x.astype(jnp.bfloat16)
    out_bf = jax.block_until_ready(
        rope_nd_forward(x_bf16, position_ids, dims_per_axis=dims_per_axis))
    ref_bf = _reference(x_bf16, position_ids, dims_per_axis)
    assert out_bf.shape == (B, H, N, D // 2, 1, 2)
    assert out_bf.dtype == jnp.float32
    np.testing.assert_allclose(np.asarray(out_bf), np.asarray(ref_bf), rtol=1e-5, atol=1e-5)

    print("KERNEL_OK")
</pallas_src>

<mosaic_0001>
module attributes {stable_mosaic.version = 11 : i64} {
  func.func @_rope_kernel(%arg0: i32, %arg1: i32, %arg2: memref<1x1x512xf32, #tpu.memory_space<vmem>>, %arg3: memref<1x1x512xf32, #tpu.memory_space<vmem>>, %arg4: memref<1x4x512xf32, #tpu.memory_space<vmem>>, %arg5: memref<1x4x512xf32, #tpu.memory_space<vmem>>) attributes {dimension_semantics = [#tpu.dimension_semantics<parallel>, #tpu.dimension_semantics<parallel>], iteration_bounds = array<i64: 2, 1>, scalar_prefetch = 0 : i64, scratch_operands = 0 : i64, tpu.core_type = #tpu.core_type<tc>, window_params = [{transform_indices = @transform_0, window_bounds = array<i64: 1, 1, 512>}, {transform_indices = @transform_1, window_bounds = array<i64: 1, 1, 512>}, {transform_indices = @transform_2, window_bounds = array<i64: 1, 4, 512>}, {transform_indices = @transform_3, window_bounds = array<i64: 1, 4, 512>}]} {
    %c0 = arith.constant 0 : index
    %c0_0 = arith.constant 0 : index
    %c0_1 = arith.constant 0 : index
    %0 = vector.load %arg4[%c0, %c0_0, %c0_1] : memref<1x4x512xf32, #tpu.memory_space<vmem>>, vector<1x4x512xf32>
    %c511_i32 = arith.constant 511 : i32
    %1 = tpu.dynamic_rotate %0 by %c511_i32 dim 2 : vector<1x4x512xf32>, i32 -> vector<1x4x512xf32>
    %c1_i32 = arith.constant 1 : i32
    %2 = tpu.dynamic_rotate %0 by %c1_i32 dim 2 : vector<1x4x512xf32>, i32 -> vector<1x4x512xf32>
    %3 = tpu.iota {dimensions = array<i32: 2>} : vector<1x4x512xi32>
    %c1_i32_2 = arith.constant 1 : i32
    %4 = vector.broadcast %c1_i32_2 : i32 to vector<1x4x512xi32>
    %5 = arith.andi %3, %4 : vector<1x4x512xi32>
    %c0_i32 = arith.constant 0 : i32
    %6 = vector.broadcast %c0_i32 : i32 to vector<1x4x512xi32>
    %7 = arith.cmpi eq, %5, %6 : vector<1x4x512xi32>
    %8 = arith.select %7, %1, %2 : vector<1x4x512xi1>, vector<1x4x512xf32>
    %c0_3 = arith.constant 0 : index
    %c0_4 = arith.constant 0 : index
    %c0_5 = arith.constant 0 : index
    %9 = vector.load %arg2[%c0_3, %c0_4, %c0_5] : memref<1x1x512xf32, #tpu.memory_space<vmem>>, vector<1x1x512xf32>
    %10 = vector.broadcast %9 : vector<1x1x512xf32> to vector<1x4x512xf32>
    %11 = arith.mulf %0, %10 : vector<1x4x512xf32>
    %c0_6 = arith.constant 0 : index
    %c0_7 = arith.constant 0 : index
    %c0_8 = arith.constant 0 : index
    %12 = vector.load %arg3[%c0_6, %c0_7, %c0_8] : memref<1x1x512xf32, #tpu.memory_space<vmem>>, vector<1x1x512xf32>
    %13 = vector.broadcast %12 : vector<1x1x512xf32> to vector<1x4x512xf32>
    %14 = arith.mulf %8, %13 : vector<1x4x512xf32>
    %15 = arith.addf %11, %14 : vector<1x4x512xf32>
    %c0_9 = arith.constant 0 : index
    %c0_10 = arith.constant 0 : index
    %c0_11 = arith.constant 0 : index
    %16 = vector.load %arg5[%c0_9, %c0_10, %c0_11] : memref<1x4x512xf32, #tpu.memory_space<vmem>>, vector<1x4x512xf32>
    tpu.vector_store %arg5[%c0_9, %c0_10, %c0_11], %15 {strides = array<i32>} : memref<1x4x512xf32, #tpu.memory_space<vmem>>, vector<1x4x512xf32>,
    return
  }
  func.func @transform_0(%arg0: i32, %arg1: i32) -> (i32, i32, i32) {
    %c0_i32 = arith.constant 0 : i32
    %c0_i32_0 = arith.constant 0 : i32
    return %arg0, %c0_i32, %arg1 : i32, i32, i32
  }
  func.func @transform_1(%arg0: i32, %arg1: i32) -> (i32, i32, i32) {
    %c0_i32 = arith.constant 0 : i32
    %c0_i32_0 = arith.constant 0 : i32
    return %arg0, %c0_i32, %arg1 : i32, i32, i32
  }
  func.func @transform_2(%arg0: i32, %arg1: i32) -> (i32, i32, i32) {
    %c0_i32 = arith.constant 0 : i32
    %c0_i32_0 = arith.constant 0 : i32
    return %arg0, %c0_i32, %arg1 : i32, i32, i32
  }
  func.func @transform_3(%arg0: i32, %arg1: i32) -> (i32, i32, i32) {
    %c0_i32 = arith.constant 0 : i32
    %c0_i32_0 = arith.constant 0 : i32
    return %arg0, %c0_i32, %arg1 : i32, i32, i32
  }
}

</mosaic_0001>

<llo_original>
// kernel: rope_nd_forward.1
$region0: #{rope_nd_forward.1}
  #allocation0 [shape = 'u32[]', space=smem, size = 0x4, offset = 0x4, fixed_abs, tag = 'smem constant byte address 0x4 - core index']
  #allocation1 [shape = 'u32[144,128]{1,0:T(1,128)}', space=vmem, size = 0x12000, scoped, tag = 'internal scratch']
  %s0 = inlined_call_operand.vmem [shape: f32[2,1,512], index: 0, kind: input, shape index: {}]
  %s1 = inlined_call_operand.vmem [shape: f32[2,1,512], index: 1, kind: input, shape index: {}]
  %s2 = inlined_call_operand.vmem [shape: f32[2,4,512], index: 2, kind: input, shape index: {}]
  %s3 = inlined_call_operand.vmem [shape: f32[2,4,512], index: 3, kind: output, shape index: {}]
  %s4 = sld [smem:[#allocation0]]
  $region45: #{rope_nd_forward.1} parent=0
    _
  %s6 = ssub.s32 1, %s4
  %s7 = scalar_select 0, %s6, %s4
  loop: start=0, step=1, limit=4
  $region2: #{rope_nd_forward.1} parent=0 // loop_pre_header
    _
  $region3: #{rope_nd_forward.1} parent=0 // loop_header
    %s9 = sphi 0, %s13
    %p10 = scmp.ge.s32.totalorder %s9, 4
    %s16 = sphi 0, %s28
    %s17 = sphi 0, %s24
    %s18 = sphi 0, %s16
    %s19 = sphi 0, %s17
    %s20 = sphi 0, %s18
    %s21 = sphi 0, %s19
    %s33 = sphi 0, %s35
    %s36 = sphi 0, %s33
    %s37 = sphi 0, %s36
    %s53 = sphi 0, %s37
    %s61 = sphi 0, %s63
    %s64 = sphi 0, %s61
    %s65 = sphi 0, %s64
    %s81 = sphi 0, %s65
    %s89 = sphi 0, %s91
    %s92 = sphi 0, %s89
    %s93 = sphi 0, %s92
    %s109 = sphi 0, %s93
    %s117 = sphi 0, %s119
    %s120 = sphi 0, %s117
    %s121 = sphi 0, %s120
    %s137 = sphi 0, %s121
  $region4: #{rope_nd_forward.1} parent=0 // loop_header_branch
    %12 = sbr.rel (%p10) target = $region8
  $region5: #{rope_nd_forward.1} parent=0 // loop_body
    %s14 = ssub.s32 %s9, 1
    %s15 = ssub.s32 %s9, 2
    %s22 = sadd.s32 1, %s17
    %p23 = scmp.ge.s32.totalorder %s22, 1
    %s24 = scalar_select %p23, 0, %s22
    %s25 = sadd.s32 1, %s16
    %s26 = scalar_select %p23, %s25, %s16
    %p27 = scmp.ge.s32.totalorder %s26, 2
    %s28 = scalar_select %p27, 0, %s26
    %s29 = ssub.s32 %s16, %s28
    %s30 = ssub.s32 %s17, %s24
    %s31 = sor.u32 %s29, %s30
    %p32 = scmp.eq.s32.totalorder %s31, 0
    %s34 = sadd.s32 %s33, 1
    %s35 = scalar_select %p32, %s33, %s34
    %p38 = pneg %p32
    %p39 = scmp.eq.s32.totalorder %s9, 1
    %p40 = por %p38, %p39
    %p41 = scmp.ne.s32.totalorder %s33, %s36
    %p42 = scmp.eq.s32.totalorder %s9, 0
    %p43 = por %p41, %p42
    %p44 = scmp.ne.s32.totalorder %s33, %s36
    %p45 = scmp.eq.s32.totalorder %s14, 1
    %p46 = por %p44, %p45
    %p47 = scmp.ne.s32.totalorder %s36, %s37
    %p48 = scmp.eq.s32.totalorder %s14, 0
    %p49 = por %p47, %p48
    %p50 = scmp.ne.s32.totalorder %s36, %s37
    %p51 = scmp.eq.s32.totalorder %s15, 1
    %p52 = por %p50, %p51
    %p54 = scmp.ne.s32.totalorder %s37, %s53
    %p55 = scmp.eq.s32.totalorder %s15, 0
    %p56 = por %p54, %p55
    %s57 = ssub.s32 %s16, %s28
    %s58 = ssub.s32 %s17, %s24
    %s59 = sor.u32 %s57, %s58
    %p60 = scmp.eq.s32.totalorder %s59, 0
    %s62 = sadd.s32 %s61, 1
    %s63 = scalar_select %p60, %s61, %s62
    %p66 = pneg %p60
    %p67 = scmp.eq.s32.totalorder %s9, 1
    %p68 = por %p66, %p67
    %p69 = scmp.ne.s32.totalorder %s61, %s64
    %p70 = scmp.eq.s32.totalorder %s9, 0
    %p71 = por %p69, %p70
    %p72 = scmp.ne.s32.totalorder %s61, %s64
    %p73 = scmp.eq.s32.totalorder %s14, 1
    %p74 = por %p72, %p73
    %p75 = scmp.ne.s32.totalorder %s64, %s65
    %p76 = scmp.eq.s32.totalorder %s14, 0
    %p77 = por %p75, %p76
    %p78 = scmp.ne.s32.totalorder %s64, %s65
    %p79 = scmp.eq.s32.totalorder %s15, 1
    %p80 = por %p78, %p79
    %p82 = scmp.ne.s32.totalorder %s65, %s81
    %p83 = scmp.eq.s32.totalorder %s15, 0
    %p84 = por %p82, %p83
    %s85 = ssub.s32 %s16, %s28
    %s86 = ssub.s32 %s17, %s24
    %s87 = sor.u32 %s85, %s86
    %p88 = scmp.eq.s32.totalorder %s87, 0
    %s90 = sadd.s32 %s89, 1
    %s91 = scalar_select %p88, %s89, %s90
    %p94 = pneg %p88
    %p95 = scmp.eq.s32.totalorder %s9, 1
    %p96 = por %p94, %p95
    %p97 = scmp.ne.s32.totalorder %s89, %s92
    %p98 = scmp.eq.s32.totalorder %s9, 0
    %p99 = por %p97, %p98
    %p100 = scmp.ne.s32.totalorder %s89, %s92
    %p101 = scmp.eq.s32.totalorder %s14, 1
    %p102 = por %p100, %p101
    %p103 = scmp.ne.s32.totalorder %s92, %s93
    %p104 = scmp.eq.s32.totalorder %s14, 0
    %p105 = por %p103, %p104
    %p106 = scmp.ne.s32.totalorder %s92, %s93
    %p107 = scmp.eq.s32.totalorder %s15, 1
    %p108 = por %p106, %p107
    %p110 = scmp.ne.s32.totalorder %s93, %s109
    %p111 = scmp.eq.s32.totalorder %s15, 0
    %p112 = por %p110, %p111
    %s113 = ssub.s32 %s16, %s28
    %s114 = ssub.s32 %s17, %s24
    %s115 = sor.u32 %s113, %s114
    %p116 = scmp.eq.s32.totalorder %s115, 0
    %s118 = sadd.s32 %s117, 1
    %s119 = scalar_select %p116, %s117, %s118
    %p122 = pneg %p116
    %p123 = scmp.eq.s32.totalorder %s9, 1
    %p124 = por %p122, %p123
    %p125 = scmp.ne.s32.totalorder %s117, %s120
    %p126 = scmp.eq.s32.totalorder %s9, 0
    %p127 = por %p125, %p126
    %p128 = scmp.ne.s32.totalorder %s117, %s120
    %p129 = scmp.eq.s32.totalorder %s14, 1
    %p130 = por %p128, %p129
    %p131 = scmp.ne.s32.totalorder %s120, %s121
    %p132 = scmp.eq.s32.totalorder %s14, 0
    %p133 = por %p131, %p132
    %p134 = scmp.ne.s32.totalorder %s120, %s121
    %p135 = scmp.eq.s32.totalorder %s15, 1
    %p136 = por %p134, %p135
    %p138 = scmp.ne.s32.totalorder %s121, %s137
    %p139 = scmp.eq.s32.totalorder %s15, 0
    %p140 = por %p138, %p139
    %p141 = scmp.le.s32.totalorder 1, %s9
    %p142 = scmp.lt.s32.totalorder %s9, 3
    %p143 = pnand %p141, %p142
    %p144 = pneg %p143
    // Predicated region
    $region9: #{rope_nd_forward.1} parent=5 // pred_check
      _
    $region10: #{rope_nd_forward.1} parent=5 // pred_check_branch
      %146 = sbr.rel (%p143) target = $region12
    $region11: #{rope_nd_forward.1} parent=5 // pred_region
      %s147 = ssub.s32 %s9, 1
    $region12: #{rope_nd_forward.1} parent=5 // pred_fallthru
      _
    %p148 = scmp.lt.s32.totalorder %s9, 2
    // Predicated region
    $region13: #{rope_nd_forward.1} parent=5 // pred_check
      %p149 = pneg %p148
    $region14: #{rope_nd_forward.1} parent=5 // pred_check_branch
      %151 = sbr.rel (%p149) target = $region16
    $region15: #{rope_nd_forward.1} parent=5 // pred_region
      // Predicated region
      $region17: #{rope_nd_forward.1} parent=15 // pred_check
        %p152 = pneg %p43
      $region18: #{rope_nd_forward.1} parent=15 // pred_check_branch
        %154 = sbr.rel (%p152) target = $region20
      $region19: #{rope_nd_forward.1} parent=15 // pred_region
        %s155 = smul.u32 4, %s17
        %p156 = scmp.lt.s32.totalorder %s16, 1
        %s157 = scalar_select %p156, %s16, 1
        %p158 = scmp.lt.s32.totalorder %s155, 3
        %s159 = scalar_select %p158, %s155, 3
        %s160 = smul.addr %s157, 4
        %s161 = sadd.s32 %s159, %s160
        %s162 = scalar_lea.vmem %s0, %s161
        %s163 = smul.u32 4, %s17
      $region20: #{rope_nd_forward.1} parent=15 // pred_fallthru
        _
      // Predicated region
      $region21: #{rope_nd_forward.1} parent=15 // pred_check
        %p164 = pneg %p71
      $region22: #{rope_nd_forward.1} parent=15 // pred_check_branch
        %166 = sbr.rel (%p164) target = $region24
      $region23: #{rope_nd_forward.1} parent=15 // pred_region
        %s167 = smul.u32 4, %s17
        %p168 = scmp.lt.s32.totalorder %s16, 1
        %s169 = scalar_select %p168, %s16, 1
        %p170 = scmp.lt.s32.totalorder %s167, 3
        %s171 = scalar_select %p170, %s167, 3
        %s172 = smul.addr %s169, 4
        %s173 = sadd.s32 %s171, %s172
        %s174 = scalar_lea.vmem %s1, %s173
        %s175 = smul.u32 4, %s17
      $region24: #{rope_nd_forward.1} parent=15 // pred_fallthru
        _
      // Predicated region
      $region25: #{rope_nd_forward.1} parent=15 // pred_check
        %p176 = pneg %p99
      $region26: #{rope_nd_forward.1} parent=15 // pred_check_branch
        %178 = sbr.rel (%p176) target = $region28
      $region27: #{rope_nd_forward.1} parent=15 // pred_region
        %s179 = smul.u32 4, %s17
        %p180 = scmp.lt.s32.totalorder %s16, 1
        %s181 = scalar_select %p180, %s16, 1
        %p182 = scmp.lt.s32.totalorder %s179, 3
        %s183 = scalar_select %p182, %s179, 3
        %s184 = smul.addr %s181, 4
        %s185 = sadd.s32 %s183, %s184
        %s186 = smul.addr %s185, 4
        %s187 = scalar_lea.vmem %s2, %s186
        %s188 = smul.u32 4, %s17
      $region28: #{rope_nd_forward.1} parent=15 // pred_fallthru
        _
    $region16: #{rope_nd_forward.1} parent=5 // pred_fallthru
      _
    %p189 = scmp.le.s32.totalorder 1, %s9
    %p190 = scmp.lt.s32.totalorder %s9, 3
    %p191 = pnand %p189, %p190
    %p192 = pneg %p191
    // Predicated region
    $region29: #{rope_nd_forward.1} parent=5 // pred_check
      _
    $region30: #{rope_nd_forward.1} parent=5 // pred_check_branch
      %194 = sbr.rel (%p191) target = $region32
    $region31: #{rope_nd_forward.1} parent=5 // pred_region
      %s195 = ssub.s32 %s9, 1
      %s196 = smul.u32 4, %s19
      %p197 = scmp.lt.s32.totalorder %s18, 1
      %s198 = scalar_select %p197, %s18, 1
      %p199 = scmp.lt.s32.totalorder %s196, 3
      %s200 = scalar_select %p199, %s196, 3
      %s201 = smul.addr %s198, 4
      %s202 = sadd.s32 %s200, %s201
      %s203 = scalar_lea.vmem %s0, %s202
      %p204 = pneg %p49
      %p205 = pneg %p46
      %s206 = smul.u32 4, %s19
      %p207 = scmp.lt.s32.totalorder %s18, 1
      %s208 = scalar_select %p207, %s18, 1
      %p209 = scmp.lt.s32.totalorder %s206, 3
      %s210 = scalar_select %p209, %s206, 3
      %s211 = smul.addr %s208, 4
      %s212 = sadd.s32 %s210, %s211
      %s213 = scalar_lea.vmem %s1, %s212
      %p214 = pneg %p77
      %p215 = pneg %p74
      %s216 = smul.u32 4, %s19
      %p217 = scmp.lt.s32.totalorder %s18, 1
      %s218 = scalar_select %p217, %s18, 1
      %p219 = scmp.lt.s32.totalorder %s216, 3
      %s220 = scalar_select %p219, %s216, 3
      %s221 = smul.addr %s218, 4
      %s222 = sadd.s32 %s220, %s221
      %s223 = smul.addr %s222, 4
      %s224 = scalar_lea.vmem %s2, %s223
      %p225 = pneg %p105
      %p226 = pneg %p102
      %p227 = pneg %p133
      %p228 = pneg %p130
      %s229 = smul.u32 4, %s19
      %p230 = scmp.lt.s32.totalorder %s18, 1
      %s231 = scalar_select %p230, %s18, 1
      %p232 = scmp.lt.s32.totalorder %s229, 3
      %s233 = scalar_select %p232, %s229, 3
      %s234 = smul.addr %s231, 4
      %s235 = sadd.s32 %s233, %s234
      %s236 = smul.addr %s235, 4
      %s237 = scalar_lea.vmem %s3, %s236
      %s238 = smul.u32 4, %s19
      %p239 = scmp.lt.s32.totalorder %s18, 1
      %s240 = scalar_select %p239, %s18, 1
      %p241 = scmp.lt.s32.totalorder %s238, 3
      %s242 = scalar_select %p241, %s238, 3
      %s243 = smul.addr %s240, 4
      %s244 = sadd.s32 %s242, %s243
      %s245 = scalar_lea.vmem %s0, %s244
      %s246 = smul.u32 4, %s19
      %s247 = smul.u32 4, %s19
      %p248 = scmp.lt.s32.totalorder %s18, 1
      %s249 = scalar_select %p248, %s18, 1
      %p250 = scmp.lt.s32.totalorder %s247, 3
      %s251 = scalar_select %p250, %s247, 3
      %s252 = smul.addr %s249, 4
      %s253 = sadd.s32 %s251, %s252
      %s254 = scalar_lea.vmem %s1, %s253
      %s255 = smul.u32 4, %s19
      %s256 = smul.u32 4, %s19
      %p257 = scmp.lt.s32.totalorder %s18, 1
      %s258 = scalar_select %p257, %s18, 1
      %p259 = scmp.lt.s32.totalorder %s256, 3
      %s260 = scalar_select %p259, %s256, 3
      %s261 = smul.addr %s258, 4
      %s262 = sadd.s32 %s260, %s261
      %s263 = smul.addr %s262, 4
      %s264 = scalar_lea.vmem %s2, %s263
      %s265 = smul.u32 4, %s19
      %s266 = smul.u32 4, %s19
      %p267 = scmp.lt.s32.totalorder %s18, 1
      %s268 = scalar_select %p267, %s18, 1
      %p269 = scmp.lt.s32.totalorder %s266, 3
      %s270 = scalar_select %p269, %s266, 3
      %s271 = smul.addr %s268, 4
      %s272 = sadd.s32 %s270, %s271
      %s273 = smul.addr %s272, 4
      %s274 = scalar_lea.vmem %s3, %s273
      %s275 = smul.u32 4, %s19
      %v276 = vld [vmem:[%s264] sm:$0xff]
      %v277 = vld [vmem:[%s264 + $0x8] sm:$0xff]
      %v280 = vcombine.high %v276, %v276
      %v281 = vcombine.high %v277, %v277
      %284 = vrot.lane.b32.xlu0 %v276, 127
      %v285 = vpop.permute.xlu0 %284
      %286 = vrot.lane.b32.xlu0 %v280, 127
      %v287 = vpop.permute.xlu0 %286
      %288 = vrot.lane.b32.xlu0 %v277, 127
      %v289 = vpop.permute.xlu0 %288
      %290 = vrot.lane.b32.xlu0 %v281, 127
      %v291 = vpop.permute.xlu0 %290
      %v292 = vlaneseq
      %v293 = vand.u32 %v292, 127
      %vm294 = vcmp.lt.s32.totalorder %v293, 127
      %v295 = vsel %vm294, %v289, %v291
      %v296 = vsel %vm294, %v287, %v289
      %v297 = vsel %vm294, %v285, %v287
      %v298 = vsel %vm294, %v291, %v285
      %299 = vrot.lane.b32.xlu0 %v276, 1
      %v300 = vpop.permute.xlu0 %299
      %301 = vrot.lane.b32.xlu0 %v280, 1
      %v302 = vpop.permute.xlu0 %301
      %303 = vrot.lane.b32.xlu0 %v277, 1
      %v304 = vpop.permute.xlu0 %303
      %305 = vrot.lane.b32.xlu0 %v281, 1
      %v306 = vpop.permute.xlu0 %305
      %vm307 = vcmp.lt.s32.totalorder %v293, 1
      %v308 = vsel %vm307, %v304, %v306
      %v309 = vsel %vm307, %v302, %v304
      %v310 = vsel %vm307, %v300, %v302
      %v311 = vsel %vm307, %v306, %v300
      %v312 = vadd.s32 %v293, 128
      %v313 = vadd.s32 %v293, 256
      %v314 = vadd.s32 %v293, 384
      %v315 = vand.u32 %v293, 1
      %v316 = vand.u32 %v312, 1
      %v317 = vand.u32 %v313, 1
      %v318 = vand.u32 %v314, 1
      %vm319 = vcmp.eq.s32.totalorder %v315, 0
      %vm320 = vcmp.eq.s32.totalorder %v316, 0
      %vm321 = vcmp.eq.s32.totalorder %v317, 0
      %vm322 = vcmp.eq.s32.totalorder %v318, 0
      %v323 = vsel %vm319, %v297, %v311
      %v324 = vsel %vm320, %v296, %v310
      %v325 = vsel %vm321, %v295, %v309
      %v326 = vsel %vm322, %v298, %v308
      %v327 = vld [vmem:[%s245] sm:$0xf]
      %v329 = vlaneseq
      %v330 = vshrl.u32 %v329, 7
      %v331 = vsub.s32 0, %v330
      %v332 = vrot.slane %v327, %v331
      %v333 = vlaneseq
      %v334 = vshrl.u32 %v333, 7
      %v335 = vsub.s32 1, %v334
      %v336 = vrot.slane %v327, %v335
      %v337 = vlaneseq
      %v338 = vshrl.u32 %v337, 7
      %v339 = vsub.s32 2, %v338
      %v340 = vrot.slane %v327, %v339
      %v341 = vlaneseq
      %v342 = vshrl.u32 %v341, 7
      %v343 = vsub.s32 3, %v342
      %v344 = vrot.slane %v327, %v343
      %v345 = vcombine.low %v332, %v336
      %v346 = vcombine.low %v340, %v344
      %v349 = vmul.f32 %v276, %v345
      %v350 = vmul.f32 %v277, %v346
      %v351 = vld [vmem:[%s254] sm:$0xf]
      %v353 = vlaneseq
      %v354 = vshrl.u32 %v353, 7
      %v355 = vsub.s32 0, %v354
      %v356 = vrot.slane %v351, %v355
      %v357 = vlaneseq
      %v358 = vshrl.u32 %v357, 7
      %v359 = vsub.s32 1, %v358
      %v360 = vrot.slane %v351, %v359
      %v361 = vlaneseq
      %v362 = vshrl.u32 %v361, 7
      %v363 = vsub.s32 2, %v362
      %v364 = vrot.slane %v351, %v363
      %v365 = vlaneseq
      %v366 = vshrl.u32 %v365, 7
      %v367 = vsub.s32 3, %v366
      %v368 = vrot.slane %v351, %v367
      %v373 = vmul.f32 %v323, %v356
      %v374 = vmul.f32 %v324, %v360
      %v375 = vmul.f32 %v325, %v364
      %v376 = vmul.f32 %v326, %v368
      %v381 = vcombine.low %v373, %v374
      %v382 = vcombine.low %v375, %v376
      %v385 = vadd.f32 %v349, %v381
      %v386 = vadd.f32 %v350, %v382
      %387 = vst [vmem:[%s274] sm:$0xff] %v385
      %388 = vst [vmem:[%s274 + $0x8] sm:$0xff] %v386
      %s389 = smul.u32 4, %s19
      %p390 = scmp.lt.s32.totalorder %s18, 1
      %s391 = scalar_select %p390, %s18, 1
      %p392 = scmp.lt.s32.totalorder %s389, 3
      %s393 = scalar_select %p392, %s389, 3
      %s394 = smul.addr %s391, 4
      %s395 = sadd.s32 %s393, %s394
      %s396 = smul.addr %s395, 4
      %s397 = scalar_lea.vmem %s3, %s396
      // Predicated region
      $region33: #{rope_nd_forward.1} parent=31 // pred_check
        %p398 = pneg %p130
      $region34: #{rope_nd_forward.1} parent=31 // pred_check_branch
        %400 = sbr.rel (%p398) target = $region36
      $region35: #{rope_nd_forward.1} parent=31 // pred_region
        %s401 = smul.u32 4, %s19
      $region36: #{rope_nd_forward.1} parent=31 // pred_fallthru
        _
    $region32: #{rope_nd_forward.1} parent=5 // pred_fallthru
      _
    %p402 = scmp.le.s32.totalorder 2, %s9
    // Predicated region
    $region37: #{rope_nd_forward.1} parent=5 // pred_check
      %p403 = pneg %p402
    $region38: #{rope_nd_forward.1} parent=5 // pred_check_branch
      %405 = sbr.rel (%p403) target = $region40
    $region39: #{rope_nd_forward.1} parent=5 // pred_region
      %s406 = ssub.s32 %s9, 2
      // Predicated region
      $region41: #{rope_nd_forward.1} parent=39 // pred_check
        %p407 = pneg %p136
      $region42: #{rope_nd_forward.1} parent=39 // pred_check_branch
        %409 = sbr.rel (%p407) target = $region44
      $region43: #{rope_nd_forward.1} parent=39 // pred_region
        %s410 = smul.u32 4, %s21
        %p411 = scmp.lt.s32.totalorder %s20, 1
        %s412 = scalar_select %p411, %s20, 1
        %p413 = scmp.lt.s32.totalorder %s410, 3
        %s414 = scalar_select %p413, %s410, 3
        %s415 = smul.addr %s412, 4
        %s416 = sadd.s32 %s414, %s415
        %s417 = smul.addr %s416, 4
        %s418 = scalar_lea.vmem %s3, %s417
      $region44: #{rope_nd_forward.1} parent=39 // pred_fallthru
        _
    $region40: #{rope_nd_forward.1} parent=5 // pred_fallthru
      _
  $region6: #{rope_nd_forward.1} parent=0 // loop_footer
    %s13 = sadd.s32 1, %s9
  $region7: #{rope_nd_forward.1} parent=0 // loop_footer_branch
    %8 = sbr.rel target = $region3
  $region8: #{rope_nd_forward.1} parent=0 // loop_exit
    _

</llo_original>
